<compile_context>
chip_gen: v7x
topology: tpu7x:2x2x1
jax: 0.10.0
libtpu: 0.0.40
codegen_flags: <defaults>
</compile_context>

<pallas_src>
import functools

import jax
import jax.numpy as jnp
from jax.experimental import pallas as pl
from jax.experimental.pallas import tpu as pltpu


# ----------------------------------------------------------------------------
# Hardware queries / small helpers
# ----------------------------------------------------------------------------
def _vmem_capacity_bytes():
    try:
        return int(pltpu.get_tpu_info().vmem_capacity_bytes)
    except Exception:
        return 64 * 1024 * 1024            # conservative (v7x per-TC VMEM)


def _supports_bf16_vector_units():
    # v6e / v7x have bf16 VPU/EUP; v5e does not.
    try:
        kind = jax.devices()[0].device_kind.lower()
    except Exception:
        return False
    return ("v6" in kind) or ("v7" in kind)


def _round_up(v, m):
    return (v + m - 1) // m * m


# ----------------------------------------------------------------------------
# Pallas kernel: fused QKV projection + attention for Bb local blocks per step.
# ----------------------------------------------------------------------------
def _pam_attn_kernel(x_ref, w_ref, b_ref, o_ref, qkv_ref, *,
                     blocks_per_step, seq_len, ck_pad, denom_row,
                     mxu_dtype, exp_dtype):
    """x_ref:  (C, Bb*N)       activations, lane-dense
       w_ref:  (Cqkv_p, C)     fused/padded q|k|v weights (q pre-scaled by Ck^-0.5)
       b_ref:  (Cqkv_p, 1)     fused bias; v-segment row `denom_row` is all-ones
       o_ref:  (Cv_seg, Bb*N)  padded context (row denom_row ~1, pad rows 0)
       qkv_ref:(Cqkv_p, Bb*N)  fp32 scratch for the projection."""
    N = seq_len

    # 1) One wide MXU pass projects q, k, v for every block of this grid step.
    qkv_ref[...] = jax.lax.dot_general(
        w_ref[...], x_ref[...].astype(mxu_dtype),
        (((1,), (0,)), ((), ())),
        preferred_element_type=jnp.float32) + b_ref[...]

    # 2) Per-block attention; fori_loop bounds the live (N, N) temporaries.
    def attend(i, carry):
        start = pl.multiple_of(i * N, 128)          # N % 128 == 0 on this path
        qkv = qkv_ref[:, pl.ds(start, N)]           # (Cqkv_p, N) fp32
        q = qkv[:ck_pad].astype(mxu_dtype)          # tile-aligned sublane slices
        k = qkv[ck_pad:2 * ck_pad].astype(mxu_dtype)
        v = qkv[2 * ck_pad:].astype(mxu_dtype)      # includes the all-ones denom row

        # sim[n, m] = sum_c q[c, n] * k[c, m]   (A^T @ B, scale folded into q)
        sim = jax.lax.dot_general(q, k, (((0,), (0,)), ((), ())),
                                  preferred_element_type=jnp.float32)
        sim = sim - jnp.max(sim, axis=-1, keepdims=True)
        e = jnp.exp(sim.astype(exp_dtype)).astype(mxu_dtype)

        # ctx[c, n] = sum_m v[c, m] * e[n, m]; row denom_row = sum_m e[n, m]
        ctx = jax.lax.dot_general(v, e, (((1,), (1,)), ((), ())),
                                  preferred_element_type=jnp.float32)
        denom = ctx[denom_row:denom_row + 1, :]               # (1, N)
        r = pl.reciprocal(denom, approx=True)
        r = r * (2.0 - denom * r)                             # one Newton step
        o_ref[:, pl.ds(start, N)] = (ctx * r).astype(o_ref.dtype)
        return carry

    jax.lax.fori_loop(0, blocks_per_step, attend, 0, unroll=True)


# ----------------------------------------------------------------------------
# Planning: VMEM budget, block batch, grid
# ----------------------------------------------------------------------------
def _vmem_bytes_needed(bb, *, C, N, ck_pad, cv_seg, in_itemsize, out_itemsize,
                       w_itemsize, exp_itemsize):
    cqkv = 2 * ck_pad + cv_seg
    L = bb * N
    io = 2 * C * L * in_itemsize + 2 * cv_seg * L * out_itemsize   # double-buffered tiles
    wts = 2 * (cqkv * C * w_itemsize + cqkv * 4)                   # resident weights + bias
    scratch = cqkv * L * 4                                         # qkv fp32 scratch
    concurrent = min(bb, 2)                                        # unrolled-loop overlap
    temps = concurrent * (N * N * (8 + exp_itemsize) + 2 * cv_seg * N * 4 + 8 * N)
    return io + wts + scratch + temps


def _pick_block_batch(n_blocks, bytes_fn, budget, max_bb=4):
    feasible = [bb for bb in range(1, min(n_blocks, max_bb) + 1)
                if n_blocks % bb == 0 and bytes_fn(bb) <= budget]
    if not feasible:
        return None

    def score(bb):
        grid = n_blocks // bb
        # Prefer an even grid >= 2 (v7x dual-TC sharding), then the largest bb.
        return (grid >= 2 and grid % 2 == 0, bb)

    return max(feasible, key=score)


def _pam_attention_pallas(x_wide, w_qkv, b_qkv, *, n_blocks, seq_len, ck_pad,
                          cv_seg, denom_row, bb, vmem_limit, mxu_dtype, exp_dtype):
    C = x_wide.shape[0]
    N = seq_len
    cqkv = w_qkv.shape[0]
    grid = n_blocks // bb
    L = bb * N

    kernel = functools.partial(
        _pam_attn_kernel, blocks_per_step=bb, seq_len=N, ck_pad=ck_pad,
        denom_row=denom_row, mxu_dtype=mxu_dtype, exp_dtype=exp_dtype)

    return pl.pallas_call(
        kernel,
        out_shape=jax.ShapeDtypeStruct((cv_seg, n_blocks * N), x_wide.dtype),
        grid_spec=pltpu.PrefetchScalarGridSpec(
            num_scalar_prefetch=0,
            grid=(grid,),
            in_specs=[
                pl.BlockSpec((C, L), lambda i: (0, i)),      # activations, lane-dense
                pl.BlockSpec((cqkv, C), lambda i: (0, 0)),   # fused weights (resident)
                pl.BlockSpec((cqkv, 1), lambda i: (0, 0)),   # fused bias
            ],
            out_specs=pl.BlockSpec((cv_seg, L), lambda i: (0, i)),
            scratch_shapes=[pltpu.VMEM((cqkv, L), jnp.float32)],
        ),
        compiler_params=pltpu.CompilerParams(
            dimension_semantics=("parallel",),
            vmem_limit_bytes=vmem_limit),
    )(x_wide, w_qkv, b_qkv)


# ----------------------------------------------------------------------------
# Fused / padded projection weights (ones row -> softmax denominator)
# ----------------------------------------------------------------------------
def _build_fused_qkv(wq, bq, wk, bk, wv, bv, *, ck_pad, cv_seg, mxu_dtype):
    Ck = wq.shape[0]
    Cv = wv.shape[0]
    inv = float(Ck) ** (-0.5)

    def pad_rows(a, rows):
        extra = rows - a.shape[0]
        if extra <= 0:
            return a
        return jnp.concatenate([a, jnp.zeros((extra,) + a.shape[1:], a.dtype)], axis=0)

    w_qkv = jnp.concatenate([pad_rows(wq * inv, ck_pad),
                             pad_rows(wk, ck_pad),
                             pad_rows(wv, cv_seg)], axis=0).astype(mxu_dtype)
    bv_seg = jnp.zeros((cv_seg,), jnp.float32).at[:Cv].set(bv.astype(jnp.float32))
    bv_seg = bv_seg.at[Cv].set(1.0)        # all-ones "value" row == softmax denominator
    b_qkv = jnp.concatenate([pad_rows((bq * inv).astype(jnp.float32), ck_pad),
                             pad_rows(bk.astype(jnp.float32), ck_pad),
                             bv_seg], axis=0)[:, None]
    return w_qkv, b_qkv


# ----------------------------------------------------------------------------
# Glue: partition into local blocks / reassemble (matches PyTorch semantics;
# per-block sequence order is (lr, ih, iw) -- softmax is permutation-invariant)
# ----------------------------------------------------------------------------
def _partition_blocks_wide(x, scale):
    """x: (b, C, h, 2w) -> x_wide: (C, n_blocks*N), block order (si, sj, b)."""
    b, c, h, w2 = x.shape
    w = w2 // 2
    # TODO(synk): ragged last block (H or W not divisible by scale) is not handled;
    # PyTorch extends the last block to the boundary in that case.
    assert h % scale == 0 and w % scale == 0, "spatial dims must divide scale"
    sh, sw = h // scale, w // scale
    xs = x.reshape(b, c, scale, sh, 2, scale, sw)        # (b, c, si, ih, lr, sj, iw)
    xw = jnp.transpose(xs, (1, 2, 5, 0, 4, 3, 6))        # (c, si, sj, b, lr, ih, iw)
    n_blocks = scale * scale * b
    N = 2 * sh * sw
    return xw.reshape(c, n_blocks * N), (b, h, w, sh, sw), n_blocks, N


def _reassemble_blocks(ctx, scale, dims):
    """ctx: (Cv, n_blocks, N) -> (b, Cv, h, 2w)."""
    cv = ctx.shape[0]
    b, h, w, sh, sw = dims
    ctx = ctx.reshape(cv, scale, scale, b, 2, sh, sw)    # (cv, si, sj, b, lr, ih, iw)
    ctx = jnp.transpose(ctx, (3, 0, 1, 5, 4, 2, 6))      # (b, cv, si, ih, lr, sj, iw)
    return ctx.reshape(b, cv, h, 2 * w)


def _upsample_nearest(x, stride):
    b_, c_, hh, ww = x.shape
    x = jnp.broadcast_to(x[:, :, :, None, :, None], (b_, c_, hh, stride, ww, stride))
    return x.reshape(b_, c_, hh * stride, ww * stride)


# ----------------------------------------------------------------------------
# Plain-XLA attention fallback (small N, or N too large for single-pass VMEM)
# ----------------------------------------------------------------------------
def _attention_xla(x_wide, params, *, n_blocks, seq_len):
    wq, bq, wk, bk, wv, bv = params
    Ck = wq.shape[0]
    C = x_wide.shape[0]
    xb = x_wide.reshape(C, n_blocks, seq_len).astype(jnp.float32)
    q = jnp.einsum("oc,cbn->obn", wq, xb) + bq[:, None, None]
    k = jnp.einsum("oc,cbn->obn", wk, xb) + bk[:, None, None]
    v = jnp.einsum("oc,cbn->obn", wv, xb) + bv[:, None, None]
    sim = jnp.einsum("obn,obm->bnm", q, k) * float(Ck) ** (-0.5)
    p = jax.nn.softmax(sim, axis=-1)
    return jnp.einsum("obm,bnm->obn", v, p)             # (Cv, n_blocks, N) fp32


# ----------------------------------------------------------------------------
# Full _PAMBlock forward
# ----------------------------------------------------------------------------
def pam_block_forward(x, params, *, scale=1, stride=1):
    """x: (b, C, H, 2W) NCHW.  params = (wq, bq, wk, bk, wv, bv) in conv
    orientation (Cout, Cin) / (Cout,), eval-mode BatchNorm pre-folded."""
    wq, bq, wk, bk, wv, bv = params
    Ck = wq.shape[0]
    Cv = wv.shape[0]

    if stride != 1:
        b_, c_, H_, W_ = x.shape
        # TODO(synk): AvgPool2d truncation for H/W not divisible by stride is not handled.
        assert H_ % stride == 0 and W_ % stride == 0
        x = x.reshape(b_, c_, H_ // stride, stride, W_ // stride, stride).mean(axis=(3, 5))

    x_wide, dims, n_blocks, N = _partition_blocks_wide(x, scale)
    C = x_wide.shape[0]

    if x.dtype == jnp.bfloat16:
        mxu_dtype = jnp.bfloat16
        exp_dtype = jnp.bfloat16 if _supports_bf16_vector_units() else jnp.float32
    else:
        mxu_dtype = jnp.float32
        exp_dtype = jnp.float32

    ck_pad = _round_up(Ck, 8)
    cv_seg = _round_up(Cv + 1, 8)          # +1 ones row -> softmax denom via V matmul

    use_pallas = (N >= 128) and (N % 128 == 0)
    bb = vmem_limit = None
    if use_pallas:
        budget = int(_vmem_capacity_bytes() * 0.85)      # leave Mosaic scratch headroom
        itemsize = jnp.dtype(x.dtype).itemsize
        bytes_fn = functools.partial(
            _vmem_bytes_needed, C=C, N=N, ck_pad=ck_pad, cv_seg=cv_seg,
            in_itemsize=itemsize, out_itemsize=itemsize,
            w_itemsize=jnp.dtype(mxu_dtype).itemsize,
            exp_itemsize=jnp.dtype(exp_dtype).itemsize)
        bb = _pick_block_batch(n_blocks, bytes_fn, budget)
        if bb is None:
            # TODO(synk): flash-style KV-tiled online softmax for N too large for a
            # single-pass (N, N) score matrix on this chip's VMEM; XLA fallback for now.
            use_pallas = False
        else:
            vmem_limit = budget if bytes_fn(bb) > 12 * 1024 * 1024 else None

    if use_pallas:
        w_qkv, b_qkv = _build_fused_qkv(wq, bq, wk, bk, wv, bv,
                                        ck_pad=ck_pad, cv_seg=cv_seg,
                                        mxu_dtype=mxu_dtype)
        ctx_pad = _pam_attention_pallas(
            x_wide, w_qkv, b_qkv, n_blocks=n_blocks, seq_len=N,
            ck_pad=ck_pad, cv_seg=cv_seg, denom_row=Cv, bb=bb,
            vmem_limit=vmem_limit, mxu_dtype=mxu_dtype, exp_dtype=exp_dtype)
        ctx = ctx_pad[:Cv].reshape(Cv, n_blocks, N)
    else:
        ctx = _attention_xla(x_wide, params, n_blocks=n_blocks,
                             seq_len=N).astype(x.dtype)

    out = _reassemble_blocks(ctx, scale, dims)
    if stride != 1:
        out = _upsample_nearest(out, stride)
    return out


# ----------------------------------------------------------------------------
# Eval-mode BatchNorm folded into the 1x1 conv.
# TODO(synk): training-mode BatchNorm (batch statistics) is not replicated.
# ----------------------------------------------------------------------------
def _fuse_conv_bn(w, b, gamma, beta, mean, var, eps=1e-5):
    s = gamma / jnp.sqrt(var + eps)
    return (w * s[:, None]).astype(jnp.float32), ((b - mean) * s + beta).astype(jnp.float32)


# ----------------------------------------------------------------------------
# Pure-JAX reference (validates the Pallas kernel math)
# ----------------------------------------------------------------------------
def _reference_forward(x, params, *, scale, stride):
    if stride != 1:
        b_, c_, H_, W_ = x.shape
        x = x.reshape(b_, c_, H_ // stride, stride, W_ // stride, stride).mean(axis=(3, 5))
    x_wide, dims, n_blocks, N = _partition_blocks_wide(x, scale)
    ctx = _attention_xla(x_wide, params, n_blocks=n_blocks, seq_len=N).astype(x.dtype)
    out = _reassemble_blocks(ctx, scale, dims)
    if stride != 1:
        out = _upsample_nearest(out, stride)
    return out


if __name__ == "__main__":
    b, C, H, W2 = 2, 4, 16, 16                      # -> w = 8
    key_channels, value_channels = 4, 4

    root = jax.random.PRNGKey(0)
    ks = jax.random.split(root, 20)
    x = jax.random.normal(ks[0], (b, C, H, W2), jnp.float32)

    def bn_params(k0, k1, k2, k3, ch):
        gamma = 1.0 + 0.1 * jax.random.normal(ks[k0], (ch,), jnp.float32)
        beta = 0.05 * jax.random.normal(ks[k1], (ch,), jnp.float32)
        mean = 0.1 * jax.random.normal(ks[k2], (ch,), jnp.float32)
        var = jnp.abs(1.0 + 0.1 * jax.random.normal(ks[k3], (ch,), jnp.float32))
        return gamma, beta, mean, var

    wq_raw = 0.2 * jax.random.normal(ks[1], (key_channels, C), jnp.float32)
    bq_raw = 0.05 * jax.random.normal(ks[2], (key_channels,), jnp.float32)
    wq, bq = _fuse_conv_bn(wq_raw, bq_raw, *bn_params(3, 4, 5, 6, key_channels))

    wk_raw = 0.2 * jax.random.normal(ks[7], (key_channels, C), jnp.float32)
    bk_raw = 0.05 * jax.random.normal(ks[8], (key_channels,), jnp.float32)
    wk, bk = _fuse_conv_bn(wk_raw, bk_raw, *bn_params(9, 10, 11, 12, key_channels))

    wv = 0.2 * jax.random.normal(ks[13], (value_channels, C), jnp.float32)
    bv = 0.05 * jax.random.normal(ks[14], (value_channels,), jnp.float32)

    params = (wq, bq, wk, bk, wv, bv)

    # Config 1: scale=1, stride=1 -> Pallas path, 2 blocks of N=256, grid=2.
    out1 = jax.block_until_ready(pam_block_forward(x, params, scale=1, stride=1))
    ref1 = _reference_forward(x, params, scale=1, stride=1)
    assert out1.shape == (b, value_channels, H, W2), out1.shape
    assert jnp.allclose(out1, ref1, atol=2e-4, rtol=2e-4), "mismatch (scale=1)"

    # Config 2: scale=2, stride=2 -> N=16 < 128: pooling/upsample + XLA fallback.
    out2 = jax.block_until_ready(pam_block_forward(x, params, scale=2, stride=2))
    ref2 = _reference_forward(x, params, scale=2, stride=2)
    assert out2.shape == (b, value_channels, H, W2), out2.shape
    assert jnp.allclose(out2, ref2, atol=2e-4, rtol=2e-4), "mismatch (scale=2,stride=2)"

    # Config 3: scale=2, stride=1 on 32x32 -> 8 blocks of N=256: exercises the
    # multi-block (Bb>1) fori_loop path of the Pallas kernel.
    x3 = jax.random.normal(ks[15], (b, C, 32, 32), jnp.float32)
    out3 = jax.block_until_ready(pam_block_forward(x3, params, scale=2, stride=1))
    ref3 = _reference_forward(x3, params, scale=2, stride=1)
    assert out3.shape == (b, value_channels, 32, 32), out3.shape
    assert jnp.allclose(out3, ref3, atol=2e-4, rtol=2e-4), "mismatch (scale=2,stride=1)"

    print("KERNEL_OK")
</pallas_src>

<mosaic_0001>
module attributes {stable_mosaic.version = 11 : i64} {
  func.func @_pam_attn_kernel(%arg0: i32, %arg1: memref<4x256xf32, #tpu.memory_space<vmem>>, %arg2: memref<24x4xf32, #tpu.memory_space<vmem>>, %arg3: memref<24x1xf32, #tpu.memory_space<vmem>>, %arg4: memref<8x256xf32, #tpu.memory_space<vmem>>, %arg5: memref<24x256xf32, #tpu.memory_space<vmem>>) attributes {dimension_semantics = [#tpu.dimension_semantics<parallel>], iteration_bounds = array<i64: 2>, scalar_prefetch = 0 : i64, scratch_operands = 1 : i64, tpu.core_type = #tpu.core_type<tc>, window_params = [{transform_indices = @transform_0, window_bounds = array<i64: 4, 256>}, {pipeline_mode = #tpu.pipeline_mode<synchronous>, transform_indices = @transform_1, window_bounds = array<i64: 24, 4>}, {pipeline_mode = #tpu.pipeline_mode<synchronous>, transform_indices = @transform_2, window_bounds = array<i64: 24, 1>}, {transform_indices = @transform_3, window_bounds = array<i64: 8, 256>}]} {
    %c0 = arith.constant 0 : index
    %c0_0 = arith.constant 0 : index
    %0 = vector.load %arg2[%c0, %c0_0] : memref<24x4xf32, #tpu.memory_space<vmem>>, vector<24x4xf32>
    %c0_1 = arith.constant 0 : index
    %c0_2 = arith.constant 0 : index
    %1 = vector.load %arg1[%c0_1, %c0_2] : memref<4x256xf32, #tpu.memory_space<vmem>>, vector<4x256xf32>
    %cst = arith.constant dense<0.000000e+00> : vector<24x256xf32>
    %2 = tpu.matmul %0, %1, %cst {dimension_numbers = #tpu.dot_dimension_numbers<[1], [0], [0], [1], [0, 0, 1, 1], [], []>} : vector<24x4xf32>, vector<4x256xf32>, vector<24x256xf32> -> vector<24x256xf32>
    %c0_3 = arith.constant 0 : index
    %c0_4 = arith.constant 0 : index
    %3 = vector.load %arg3[%c0_3, %c0_4] : memref<24x1xf32, #tpu.memory_space<vmem>>, vector<24x1xf32>
    %4 = vector.broadcast %3 : vector<24x1xf32> to vector<24x256xf32>
    %5 = arith.addf %2, %4 : vector<24x256xf32>
    %c0_5 = arith.constant 0 : index
    %c0_6 = arith.constant 0 : index
    %6 = vector.load %arg5[%c0_5, %c0_6] : memref<24x256xf32, #tpu.memory_space<vmem>>, vector<24x256xf32>
    tpu.vector_store %arg5[%c0_5, %c0_6], %5 {strides = array<i32>} : memref<24x256xf32, #tpu.memory_space<vmem>>, vector<24x256xf32>,
    %c0_i32 = arith.constant 0 : i32
    %c256_i32 = arith.constant 256 : i32
    %7 = arith.muli %c0_i32, %c256_i32 : i32
    %8 = tpu.assume_multiple %7, 128 : i32
    %c0_7 = arith.constant 0 : index
    %9 = arith.index_cast %8 : i32 to index
    %10 = vector.load %arg5[%c0_7, %9] : memref<24x256xf32, #tpu.memory_space<vmem>>, vector<24x256xf32>
    %11 = vector.extract_strided_slice %10 {offsets = [0, 0], sizes = [8, 256], strides = [1, 1]} : vector<24x256xf32> to vector<8x256xf32>
    %12 = vector.extract_strided_slice %10 {offsets = [8, 0], sizes = [8, 256], strides = [1, 1]} : vector<24x256xf32> to vector<8x256xf32>
    %13 = vector.extract_strided_slice %10 {offsets = [16, 0], sizes = [8, 256], strides = [1, 1]} : vector<24x256xf32> to vector<8x256xf32>
    %cst_8 = arith.constant dense<0.000000e+00> : vector<256x256xf32>
    %14 = tpu.matmul %11, %12, %cst_8 {dimension_numbers = #tpu.dot_dimension_numbers<[0], [0], [1], [1], [0, 1, 1, 1], [], []>} : vector<8x256xf32>, vector<8x256xf32>, vector<256x256xf32> -> vector<256x256xf32>
    %cst_9 = arith.constant dense<0xFF800000> : vector<256xf32>
    %15 = vector.multi_reduction <maximumf>, %14, %cst_9 [1] : vector<256x256xf32> to vector<256xf32>
    %16 = vector.shape_cast %15 : vector<256xf32> to vector<256x1xf32>
    %17 = vector.broadcast %16 : vector<256x1xf32> to vector<256x256xf32>
    %18 = arith.subf %14, %17 : vector<256x256xf32>
    %19 = math.exp %18 : vector<256x256xf32>
    %cst_10 = arith.constant dense<0.000000e+00> : vector<8x256xf32>
    %20 = tpu.matmul %13, %19, %cst_10 {dimension_numbers = #tpu.dot_dimension_numbers<[1], [1], [0], [0], [0, 0, 1, 0], [], []>} : vector<8x256xf32>, vector<256x256xf32>, vector<8x256xf32> -> vector<8x256xf32>
    %21 = vector.extract_strided_slice %20 {offsets = [4, 0], sizes = [1, 256], strides = [1, 1]} : vector<8x256xf32> to vector<1x256xf32>
    %22 = tpu.reciprocal %21 {approx = true} : vector<1x256xf32> -> vector<1x256xf32>
    %23 = arith.mulf %21, %22 : vector<1x256xf32>
    %cst_11 = arith.constant 2.000000e+00 : f32
    %24 = vector.broadcast %cst_11 : f32 to vector<1x256xf32>
    %25 = arith.subf %24, %23 : vector<1x256xf32>
    %26 = arith.mulf %22, %25 : vector<1x256xf32>
    %27 = vector.broadcast %26 : vector<1x256xf32> to vector<8x256xf32>
    %28 = arith.mulf %20, %27 : vector<8x256xf32>
    %c0_12 = arith.constant 0 : index
    %29 = arith.index_cast %8 : i32 to index
    %30 = vector.load %arg4[%c0_12, %29] : memref<8x256xf32, #tpu.memory_space<vmem>>, vector<8x256xf32>
    tpu.vector_store %arg4[%c0_12, %29], %28 {strides = array<i32>} : memref<8x256xf32, #tpu.memory_space<vmem>>, vector<8x256xf32>,
    %c1_i32 = arith.constant 1 : i32
    return
  }
  func.func @transform_0(%arg0: i32) -> (i32, i32) {
    %c0_i32 = arith.constant 0 : i32
    %c0_i32_0 = arith.constant 0 : i32
    return %c0_i32, %arg0 : i32, i32
  }
  func.func @transform_1(%arg0: i32) -> (i32, i32) {
    %c0_i32 = arith.constant 0 : i32
    %c0_i32_0 = arith.constant 0 : i32
    %c0_i32_1 = arith.constant 0 : i32
    return %c0_i32, %c0_i32_0 : i32, i32
  }
  func.func @transform_2(%arg0: i32) -> (i32, i32) {
    %c0_i32 = arith.constant 0 : i32
    %c0_i32_0 = arith.constant 0 : i32
    %c0_i32_1 = arith.constant 0 : i32
    return %c0_i32, %c0_i32_0 : i32, i32
  }
  func.func @transform_3(%arg0: i32) -> (i32, i32) {
    %c0_i32 = arith.constant 0 : i32
    %c0_i32_0 = arith.constant 0 : i32
    return %c0_i32, %arg0 : i32, i32
  }
}

</mosaic_0001>

<llo_original>
// kernel: tpu_custom_call.1
$region0: #{tpu_custom_call.1}
  #allocation0 [shape = 'u32[]', space=smem, size = 0x4, offset = 0x4, fixed_abs, tag = 'smem constant byte address 0x4 - core index']
  #allocation1 [shape = 'u32[144,128]{1,0:T(1,128)}', space=vmem, size = 0x12000, scoped, tag = 'internal scratch']
  #allocation2 [shape = 'f32[24,256]{1,0:T(8,128)}', space=vmem, size = 0x6000, scoped, tag = 'scratch operand']
  %s0 = inlined_call_operand.vmem [shape: f32[4,512], index: 0, kind: input, shape index: {}]
  %s1 = inlined_call_operand.vmem [shape: f32[24,4], index: 1, kind: input, shape index: {}]
  %s2 = inlined_call_operand.vmem [shape: f32[24,1], index: 2, kind: input, shape index: {}]
  %s3 = inlined_call_operand.hbm [shape: f32[8,512], index: 3, kind: output, shape index: {}]
  %s4 = sld [smem:[#allocation0]]
  $region45: #{tpu_custom_call.1} parent=0
    _
  %s6 = ssub.s32 1, %s4
  %s7 = scalar_select 0, %s6, %s4
  $region1: #{tpu_custom_call.1} parent=0
    #allocation3 [shape = 'u8[16384]{0}', space=vmem, size = 0x4000, scoped, tag = 'output window, operand 0']
    #allocation4 [shape = 's32[2]{0}', space=sflag, size = 0x8, scoped, tag = 'scoped memory for tpu_custom_call.1']
    %8 = vsyncpa [#allocation4], 0
    %s9 = scalar_lea.sflag [#allocation4], 1
    %10 = vsyncpa %s9, 0
    loop: start=0, step=1, limit=4
    $region2: #{tpu_custom_call.1} parent=1 // loop_pre_header
      _
    $region3: #{tpu_custom_call.1} parent=1 // loop_header
      %s12 = sphi 0, %s16
      %p13 = scmp.ge.s32.totalorder %s12, 4
      %s22 = sphi 0, %s24
      %s25 = sphi 0, %s22
      %s26 = sphi 0, %s25
      %s42 = sphi 0, %s26
      %s46 = sphi 0, %s46
      %s48 = sphi 0, %s46
      %s49 = sphi 0, %s48
      %s63 = sphi 0, %s49
      %s67 = sphi 0, %s67
      %s69 = sphi 0, %s67
      %s70 = sphi 0, %s69
      %s84 = sphi 0, %s70
      %s90 = sphi 0, %s92
      %s93 = sphi 0, %s90
      %s94 = sphi 0, %s93
      %s110 = sphi 0, %s94
    $region4: #{tpu_custom_call.1} parent=1 // loop_header_branch
      %15 = sbr.rel (%p13) target = $region8
    $region5: #{tpu_custom_call.1} parent=1 // loop_body
      %s17 = ssub.s32 %s12, 1
      %s18 = ssub.s32 %s12, 2
      %s19 = sadd.s32 %s12, 1
      %s20 = ssub.s32 %s12, %s19
      %p21 = scmp.eq.s32.totalorder %s20, 0
      %s23 = sadd.s32 %s22, 1
      %s24 = scalar_select %p21, %s22, %s23
      %p27 = pneg %p21
      %p28 = scmp.eq.s32.totalorder %s12, 1
      %p29 = por %p27, %p28
      %p30 = scmp.ne.s32.totalorder %s22, %s25
      %p31 = scmp.eq.s32.totalorder %s12, 0
      %p32 = por %p30, %p31
      %p33 = scmp.ne.s32.totalorder %s22, %s25
      %p34 = scmp.eq.s32.totalorder %s17, 1
      %p35 = por %p33, %p34
      %p36 = scmp.ne.s32.totalorder %s25, %s26
      %p37 = scmp.eq.s32.totalorder %s17, 0
      %p38 = por %p36, %p37
      %p39 = scmp.ne.s32.totalorder %s25, %s26
      %p40 = scmp.eq.s32.totalorder %s18, 1
      %p41 = por %p39, %p40
      %p43 = scmp.ne.s32.totalorder %s26, %s42
      %p44 = scmp.eq.s32.totalorder %s18, 0
      %p45 = por %p43, %p44
      %s47 = sadd.s32 %s46, 1
      %p50 = scmp.eq.s32.totalorder %s12, 1
      %p51 = scmp.ne.s32.totalorder %s46, %s48
      %p52 = scmp.eq.s32.totalorder %s12, 0
      %p53 = por %p51, %p52
      %p54 = scmp.ne.s32.totalorder %s46, %s48
      %p55 = scmp.eq.s32.totalorder %s17, 1
      %p56 = por %p54, %p55
      %p57 = scmp.ne.s32.totalorder %s48, %s49
      %p58 = scmp.eq.s32.totalorder %s17, 0
      %p59 = por %p57, %p58
      %p60 = scmp.ne.s32.totalorder %s48, %s49
      %p61 = scmp.eq.s32.totalorder %s18, 1
      %p62 = por %p60, %p61
      %p64 = scmp.ne.s32.totalorder %s49, %s63
      %p65 = scmp.eq.s32.totalorder %s18, 0
      %p66 = por %p64, %p65
      %s68 = sadd.s32 %s67, 1
      %p71 = scmp.eq.s32.totalorder %s12, 1
      %p72 = scmp.ne.s32.totalorder %s67, %s69
      %p73 = scmp.eq.s32.totalorder %s12, 0
      %p74 = por %p72, %p73
      %p75 = scmp.ne.s32.totalorder %s67, %s69
      %p76 = scmp.eq.s32.totalorder %s17, 1
      %p77 = por %p75, %p76
      %p78 = scmp.ne.s32.totalorder %s69, %s70
      %p79 = scmp.eq.s32.totalorder %s17, 0
      %p80 = por %p78, %p79
      %p81 = scmp.ne.s32.totalorder %s69, %s70
      %p82 = scmp.eq.s32.totalorder %s18, 1
      %p83 = por %p81, %p82
      %p85 = scmp.ne.s32.totalorder %s70, %s84
      %p86 = scmp.eq.s32.totalorder %s18, 0
      %p87 = por %p85, %p86
      %s88 = ssub.s32 %s12, %s19
      %p89 = scmp.eq.s32.totalorder %s88, 0
      %s91 = sadd.s32 %s90, 1
      %s92 = scalar_select %p89, %s90, %s91
      %p95 = pneg %p89
      %p96 = scmp.eq.s32.totalorder %s12, 1
      %p97 = por %p95, %p96
      %p98 = scmp.ne.s32.totalorder %s90, %s93
      %p99 = scmp.eq.s32.totalorder %s12, 0
      %p100 = por %p98, %p99
      %p101 = scmp.ne.s32.totalorder %s90, %s93
      %p102 = scmp.eq.s32.totalorder %s17, 1
      %p103 = por %p101, %p102
      %p104 = scmp.ne.s32.totalorder %s93, %s94
      %p105 = scmp.eq.s32.totalorder %s17, 0
      %p106 = por %p104, %p105
      %p107 = scmp.ne.s32.totalorder %s93, %s94
      %p108 = scmp.eq.s32.totalorder %s18, 1
      %p109 = por %p107, %p108
      %p111 = scmp.ne.s32.totalorder %s94, %s110
      %p112 = scmp.eq.s32.totalorder %s18, 0
      %p113 = por %p111, %p112
      %p114 = scmp.le.s32.totalorder 1, %s12
      %p115 = scmp.lt.s32.totalorder %s12, 3
      %p116 = pnand %p114, %p115
      %p117 = pneg %p116
      // Predicated region
      $region9: #{tpu_custom_call.1} parent=5 // pred_check
        _
      $region10: #{tpu_custom_call.1} parent=5 // pred_check_branch
        %119 = sbr.rel (%p116) target = $region12
      $region11: #{tpu_custom_call.1} parent=5 // pred_region
        %s120 = ssub.s32 %s12, 1
        // Predicated region
        $region13: #{tpu_custom_call.1} parent=11 // pred_check
          %p121 = pneg %p59
        $region14: #{tpu_custom_call.1} parent=11 // pred_check_branch
          %123 = sbr.rel (%p121) target = $region16
        $region15: #{tpu_custom_call.1} parent=11 // pred_region
          _
        $region16: #{tpu_custom_call.1} parent=11 // pred_fallthru
          _
        // Predicated region
        $region17: #{tpu_custom_call.1} parent=11 // pred_check
          %p124 = pneg %p80
        $region18: #{tpu_custom_call.1} parent=11 // pred_check_branch
          %126 = sbr.rel (%p124) target = $region20
        $region19: #{tpu_custom_call.1} parent=11 // pred_region
          _
        $region20: #{tpu_custom_call.1} parent=11 // pred_fallthru
          _
      $region12: #{tpu_custom_call.1} parent=5 // pred_fallthru
        _
      %p127 = scmp.lt.s32.totalorder %s12, 2
      // Predicated region
      $region21: #{tpu_custom_call.1} parent=5 // pred_check
        %p128 = pneg %p127
      $region22: #{tpu_custom_call.1} parent=5 // pred_check_branch
        %130 = sbr.rel (%p128) target = $region24
      $region23: #{tpu_custom_call.1} parent=5 // pred_region
        // Predicated region
        $region25: #{tpu_custom_call.1} parent=23 // pred_check
          %p131 = pneg %p32
        $region26: #{tpu_custom_call.1} parent=23 // pred_check_branch
          %133 = sbr.rel (%p131) target = $region28
        $region27: #{tpu_custom_call.1} parent=23 // pred_region
          %s134 = smul.u32 2, %s12
          %p135 = scmp.lt.s32.totalorder %s134, 3
          %s136 = scalar_select %p135, %s134, 3
          %s137 = smul.addr %s136, 4
          %s138 = scalar_lea.vmem %s0, %s137
          %s139 = smul.u32 2, %s12
        $region28: #{tpu_custom_call.1} parent=23 // pred_fallthru
          _
      $region24: #{tpu_custom_call.1} parent=5 // pred_fallthru
        _
      %p140 = scmp.le.s32.totalorder 1, %s12
      %p141 = scmp.lt.s32.totalorder %s12, 3
      %p142 = pnand %p140, %p141
      %p143 = pneg %p142
      // Predicated region
      $region29: #{tpu_custom_call.1} parent=5 // pred_check
        _
      $region30: #{tpu_custom_call.1} parent=5 // pred_check_branch
        %145 = sbr.rel (%p142) target = $region32
      $region31: #{tpu_custom_call.1} parent=5 // pred_region
        %s146 = ssub.s32 %s12, 1
        %s147 = smul.u32 2, %s17
        %p148 = scmp.lt.s32.totalorder %s147, 3
        %s149 = scalar_select %p148, %s147, 3
        %s150 = smul.addr %s149, 4
        %s151 = scalar_lea.vmem %s0, %s150
        %p152 = pneg %p38
        %p153 = pneg %p35
        %p154 = pneg %p59
        %p155 = pneg %p56
        %p156 = pneg %p80
        %p157 = pneg %p77
        %p158 = pneg %p106
        %p159 = pneg %p103
        %s160 = sand.u32 %s93, 1
        %s161 = scalar_lea.sflag [#allocation4], %s160
        %s162 = sand.u32 %s93, 1
        %s163 = smul.addr %s162, 16
        %s164 = scalar_lea.vmem [#allocation3], %s163
        %s165 = smul.u32 2, %s17
        %p166 = scmp.lt.s32.totalorder %s165, 3
        %s167 = scalar_select %p166, %s165, 3
        %s168 = smul.addr %s167, 4
        %s169 = scalar_lea.vmem %s0, %s168
        %s170 = smul.u32 2, %s17
        %s171 = smul.u32 2, %s17
        %v172 = vld [vmem:[%s1] sm:$0xff]
        %v173 = vld [vmem:[%s1 + $0x8] sm:$0xff]
        %v174 = vld [vmem:[%s1 + $0x10] sm:$0xff]
        %v175 = vld [vmem:[%s169] sm:$0xff]
        %v176 = vld [vmem:[%s2] sm:$0xff]
        %v177 = vld [vmem:[%s2 + $0x8] sm:$0xff]
        %v178 = vld [vmem:[%s2 + $0x10] sm:$0xff]
        %180 = vset.pattern.permute.xlu0 0
        %181 = vperm.xlu0 %180, %v176
        %v182 = vpop.permute.xlu0 %181
        %185 = vset.pattern.permute.xlu0 0
        %186 = vperm.xlu0 %185, %v177
        %v187 = vpop.permute.xlu0 %186
        %190 = vset.pattern.permute.xlu0 0
        %191 = vperm.xlu0 %190, %v178
        %v192 = vpop.permute.xlu0 %191
        %v195 = vcombine.high %v175, %v175
        %vm196 = vcmask 31744
        %v198 = vsel %vm196, %v172, 0
        %v201 = vsel %vm196, %v173, 0
        %v204 = vsel %vm196, %v174, 0
        %vm206 = vcmask 1043456
        %v207 = vsel %vm206, %v175, 0
        %v209 = vsel %vm206, %v195, 0
        %211 = vmatprep.subr.mxu0 %v209
        %212 = vmatpush1.msra.mxu0 %v207
        %213 = vmatprep.subr.mxu0 0.0
        %214 = vmatpush1.msra.mxu0 0.0
        %215 = vmatprep.subr.mxu0 0.0
        %216 = vmatpush1.msra.mxu0 0.0
        %217 = vmatprep.subr.mxu0 0.0
        %218 = vmatpush1.msra.mxu0 0.0
        %219 = vmatprep.subr.mxu0 0.0
        %220 = vmatpush1.msra.mxu0 0.0
        %221 = vmatprep.subr.mxu0 0.0
        %222 = vmatpush1.msra.mxu0 0.0
        %223 = vmatprep.subr.mxu0 0.0
        %224 = vmatpush1.msra.mxu0 0.0
        %225 = vmatprep.subr.mxu0 0.0
        %226 = vmatpush1.msra.mxu0 0.0
        %227 = vmatprep.subr.mxu0 0.0
        %228 = vmatpush1.msra.mxu0 0.0
        %229 = vmatprep.subr.mxu0 0.0
        %230 = vmatpush1.msra.mxu0 0.0
        %231 = vmatprep.subr.mxu0 0.0
        %232 = vmatpush1.msra.mxu0 0.0
        %233 = vmatprep.subr.mxu0 0.0
        %234 = vmatpush1.msra.mxu0 0.0
        %235 = vmatprep.subr.mxu0 0.0
        %236 = vmatpush1.msra.mxu0 0.0
        %237 = vmatprep.subr.mxu0 0.0
        %238 = vmatpush1.msra.mxu0 0.0
        %239 = vmatprep.subr.mxu0 0.0
        %240 = vmatpush1.msra.mxu0 0.0
        %241 = vmatprep.subr.mxu0 0.0
        %242 = vmatpush1.msra.mxu0 0.0
        %243 = vmatprep.subr.mxu0 0.0
        %244 = vmatpush1.msra.mxu0 0.0
        %245 = vmatprep.subr.mxu0 0.0
        %246 = vmatpush1.msra.mxu0 0.0
        %247 = vmatprep.subr.mxu0 0.0
        %248 = vmatpush1.msra.mxu0 0.0
        %249 = vmatprep.subr.mxu0 0.0
        %250 = vmatpush1.msra.mxu0 0.0
        %251 = vmatprep.subr.mxu0 0.0
        %252 = vmatpush1.msra.mxu0 0.0
        %253 = vmatprep.subr.mxu0 0.0
        %254 = vmatpush1.msra.mxu0 0.0
        %255 = vmatprep.subr.mxu0 0.0
        %256 = vmatpush1.msra.mxu0 0.0
        %257 = vmatprep.subr.mxu0 0.0
        %258 = vmatpush1.msra.mxu0 0.0
        %259 = vmatprep.subr.mxu0 0.0
        %260 = vmatpush1.msra.mxu0 0.0
        %261 = vmatprep.subr.mxu0 0.0
        %262 = vmatpush1.msra.mxu0 0.0
        %263 = vmatprep.subr.mxu0 0.0
        %264 = vmatpush1.msra.mxu0 0.0
        %265 = vmatprep.subr.mxu0 0.0
        %266 = vmatpush1.msra.mxu0 0.0
        %267 = vmatprep.subr.mxu0 0.0
        %268 = vmatpush1.msra.mxu0 0.0
        %269 = vmatprep.subr.mxu0 0.0
        %270 = vmatpush1.msra.mxu0 0.0
        %271 = vmatprep.subr.mxu0 0.0
        %272 = vmatpush1.msra.mxu0 0.0
        %273 = vmatprep.subr.mxu0 0.0
        %274 = vmatpush1.msra.mxu0 0.0
        %275 = vmatprep.mubr.f32.mxu0 0.0
        %276 = vmatmul.mubr.f32.gmra.mrb[0].mxu0 %v198
        %v277 = vpop.f32.mrb[0].mxu0
        %v278 = vadd.f32 %v182, %v277
        %v279 = vpop.f32.mrb[0].mxu0
        %v280 = vadd.f32 %v182, %v279
        %281 = vmatprep.mubr.f32.mxu0 0.0
        %282 = vmatmul.mubr.f32.gmra.mrb[0].mxu0 %v201
        %v283 = vpop.f32.mrb[0].mxu0
        %v284 = vadd.f32 %v187, %v283
        %v285 = vpop.f32.mrb[0].mxu0
        %v286 = vadd.f32 %v187, %v285
        %287 = vmatprep.mubr.f32.mxu0 0.0
        %288 = vmatmul.mubr.f32.gmra.mrb[0].mxu0 %v204
        %v289 = vpop.f32.mrb[0].mxu0
        %v290 = vadd.f32 %v192, %v289
        %v291 = vpop.f32.mrb[0].mxu0
        %v292 = vadd.f32 %v192, %v291
        %293 = vdwg.mxu0
        %294 = vst [vmem:[#allocation2] sm:$0xff] %v278
        %295 = vst [vmem:[#allocation2 + $0x8] sm:$0xff] %v280
        %296 = vst [vmem:[#allocation2 + $0x10] sm:$0xff] %v284
        %297 = vst [vmem:[#allocation2 + $0x18] sm:$0xff] %v286
        %298 = vst [vmem:[#allocation2 + $0x20] sm:$0xff] %v290
        %299 = vst [vmem:[#allocation2 + $0x28] sm:$0xff] %v292
        %v300 = vld [vmem:[#allocation2] sm:$0xff]
        %v301 = vld [vmem:[#allocation2 + $0x8] sm:$0xff]
        %v302 = vld [vmem:[#allocation2 + $0x10] sm:$0xff]
        %v303 = vld [vmem:[#allocation2 + $0x18] sm:$0xff]
        %v304 = vld [vmem:[#allocation2 + $0x20] sm:$0xff]
        %v305 = vld [vmem:[#allocation2 + $0x28] sm:$0xff]
        %306 = vxpose.xlu0.b32.start [1/16] %v300, 128
        %307 = vxpose.xlu0.b32.cont [2/16] 0.0, 128
        %308 = vxpose.xlu0.b32.cont [3/16] 0.0, 128
        %309 = vxpose.xlu0.b32.cont [4/16] 0.0, 128
        %310 = vxpose.xlu0.b32.cont [5/16] 0.0, 128
        %311 = vxpose.xlu0.b32.cont [6/16] 0.0, 128
        %312 = vxpose.xlu0.b32.cont [7/16] 0.0, 128
        %313 = vxpose.xlu0.b32.cont [8/16] 0.0, 128
        %314 = vxpose.xlu0.b32.cont [9/16] 0.0, 128
        %315 = vxpose.xlu0.b32.cont [10/16] 0.0, 128
        %316 = vxpose.xlu0.b32.cont [11/16] 0.0, 128
        %317 = vxpose.xlu0.b32.cont [12/16] 0.0, 128
        %318 = vxpose.xlu0.b32.cont [13/16] 0.0, 128
        %319 = vxpose.xlu0.b32.cont [14/16] 0.0, 128
        %320 = vxpose.xlu0.b32.cont [15/16] 0.0, 128
        %321 = vxpose.xlu0.b32.end [16/16] 0.0, 128
        %v322 = vpop.trf.xlu0
        %v323 = vpop.trf.xlu0
        %v324 = vpop.trf.xlu0
        %v325 = vpop.trf.xlu0
        %v326 = vpop.trf.xlu0
        %v327 = vpop.trf.xlu0
        %v328 = vpop.trf.xlu0
        %v329 = vpop.trf.xlu0
        %v330 = vpop.trf.xlu0
        %v331 = vpop.trf.xlu0
        %v332 = vpop.trf.xlu0
        %v333 = vpop.trf.xlu0
        %v334 = vpop.trf.xlu0
        %v335 = vpop.trf.xlu0
        %v336 = vpop.trf.xlu0
        %v337 = vpop.trf.xlu0
        %338 = vxpose.xlu0.b32.start [1/16] %v301, 128
        %339 = vxpose.xlu0.b32.cont [2/16] 0.0, 128
        %340 = vxpose.xlu0.b32.cont [3/16] 0.0, 128
        %341 = vxpose.xlu0.b32.cont [4/16] 0.0, 128
        %342 = vxpose.xlu0.b32.cont [5/16] 0.0, 128
        %343 = vxpose.xlu0.b32.cont [6/16] 0.0, 128
        %344 = vxpose.xlu0.b32.cont [7/16] 0.0, 128
        %345 = vxpose.xlu0.b32.cont [8/16] 0.0, 128
        %346 = vxpose.xlu0.b32.cont [9/16] 0.0, 128
        %347 = vxpose.xlu0.b32.cont [10/16] 0.0, 128
        %348 = vxpose.xlu0.b32.cont [11/16] 0.0, 128
        %349 = vxpose.xlu0.b32.cont [12/16] 0.0, 128
        %350 = vxpose.xlu0.b32.cont [13/16] 0.0, 128
        %351 = vxpose.xlu0.b32.cont [14/16] 0.0, 128
        %352 = vxpose.xlu0.b32.cont [15/16] 0.0, 128
        %353 = vxpose.xlu0.b32.end [16/16] 0.0, 128
        %v354 = vpop.trf.xlu0
        %v355 = vpop.trf.xlu0
        %v356 = vpop.trf.xlu0
        %v357 = vpop.trf.xlu0
        %v358 = vpop.trf.xlu0
        %v359 = vpop.trf.xlu0
        %v360 = vpop.trf.xlu0
        %v361 = vpop.trf.xlu0
        %v362 = vpop.trf.xlu0
        %v363 = vpop.trf.xlu0
        %v364 = vpop.trf.xlu0
        %v365 = vpop.trf.xlu0
        %v366 = vpop.trf.xlu0
        %v367 = vpop.trf.xlu0
        %v368 = vpop.trf.xlu0
        %v369 = vpop.trf.xlu0
        %vm370 = vcmask 64512
        %v372 = vsel %vm370, %v322, 0
        %v375 = vsel %vm370, %v323, 0
        %v378 = vsel %vm370, %v324, 0
        %v381 = vsel %vm370, %v325, 0
        %v384 = vsel %vm370, %v326, 0
        %v387 = vsel %vm370, %v327, 0
        %v390 = vsel %vm370, %v328, 0
        %v393 = vsel %vm370, %v329, 0
        %v396 = vsel %vm370, %v330, 0
        %v399 = vsel %vm370, %v331, 0
        %v402 = vsel %vm370, %v332, 0
        %v405 = vsel %vm370, %v333, 0
        %v408 = vsel %vm370, %v334, 0
        %v411 = vsel %vm370, %v335, 0
        %v414 = vsel %vm370, %v336, 0
        %v417 = vsel %vm370, %v337, 0
        %v420 = vsel %vm370, %v354, 0
        %v423 = vsel %vm370, %v355, 0
        %v426 = vsel %vm370, %v356, 0
        %v429 = vsel %vm370, %v357, 0
        %v432 = vsel %vm370, %v358, 0
        %v435 = vsel %vm370, %v359, 0
        %v438 = vsel %vm370, %v360, 0
        %v441 = vsel %vm370, %v361, 0
        %v444 = vsel %vm370, %v362, 0
        %v447 = vsel %vm370, %v363, 0
        %v450 = vsel %vm370, %v364, 0
        %v453 = vsel %vm370, %v365, 0
        %v456 = vsel %vm370, %v366, 0
        %v459 = vsel %vm370, %v367, 0
        %v462 = vsel %vm370, %v368, 0
        %v465 = vsel %vm370, %v369, 0
        %467 = vmatprep.subr.mxu0 %v303
        %468 = vmatpush1.msra.mxu0 %v302
        %469 = vmatprep.subr.mxu0 0.0
        %470 = vmatpush1.msra.mxu0 0.0
        %471 = vmatprep.subr.mxu0 0.0
        %472 = vmatpush1.msra.mxu0 0.0
        %473 = vmatprep.subr.mxu0 0.0
        %474 = vmatpush1.msra.mxu0 0.0
        %475 = vmatprep.subr.mxu0 0.0
        %476 = vmatpush1.msra.mxu0 0.0
        %477 = vmatprep.subr.mxu0 0.0
        %478 = vmatpush1.msra.mxu0 0.0
        %479 = vmatprep.subr.mxu0 0.0
        %480 = vmatpush1.msra.mxu0 0.0
        %481 = vmatprep.subr.mxu0 0.0
        %482 = vmatpush1.msra.mxu0 0.0
        %483 = vmatprep.subr.mxu0 0.0
        %484 = vmatpush1.msra.mxu0 0.0
        %485 = vmatprep.subr.mxu0 0.0
        %486 = vmatpush1.msra.mxu0 0.0
        %487 = vmatprep.subr.mxu0 0.0
        %488 = vmatpush1.msra.mxu0 0.0
        %489 = vmatprep.subr.mxu0 0.0
        %490 = vmatpush1.msra.mxu0 0.0
        %491 = vmatprep.subr.mxu0 0.0
        %492 = vmatpush1.msra.mxu0 0.0
        %493 = vmatprep.subr.mxu0 0.0
        %494 = vmatpush1.msra.mxu0 0.0
        %495 = vmatprep.subr.mxu0 0.0
        %496 = vmatpush1.msra.mxu0 0.0
        %497 = vmatprep.subr.mxu0 0.0
        %498 = vmatpush1.msra.mxu0 0.0
        %499 = vmatprep.subr.mxu0 0.0
        %500 = vmatpush1.msra.mxu0 0.0
        %501 = vmatprep.subr.mxu0 0.0
        %502 = vmatpush1.msra.mxu0 0.0
        %503 = vmatprep.subr.mxu0 0.0
        %504 = vmatpush1.msra.mxu0 0.0
        %505 = vmatprep.subr.mxu0 0.0
        %506 = vmatpush1.msra.mxu0 0.0
        %507 = vmatprep.subr.mxu0 0.0
        %508 = vmatpush1.msra.mxu0 0.0
        %509 = vmatprep.subr.mxu0 0.0
        %510 = vmatpush1.msra.mxu0 0.0
        %511 = vmatprep.subr.mxu0 0.0
        %512 = vmatpush1.msra.mxu0 0.0
        %513 = vmatprep.subr.mxu0 0.0
        %514 = vmatpush1.msra.mxu0 0.0
        %515 = vmatprep.subr.mxu0 0.0
        %516 = vmatpush1.msra.mxu0 0.0
        %517 = vmatprep.subr.mxu0 0.0
        %518 = vmatpush1.msra.mxu0 0.0
        %519 = vmatprep.subr.mxu0 0.0
        %520 = vmatpush1.msra.mxu0 0.0
        %521 = vmatprep.subr.mxu0 0.0
        %522 = vmatpush1.msra.mxu0 0.0
        %523 = vmatprep.subr.mxu0 0.0
        %524 = vmatpush1.msra.mxu0 0.0
        %525 = vmatprep.subr.mxu0 0.0
        %526 = vmatpush1.msra.mxu0 0.0
        %527 = vmatprep.subr.mxu0 0.0
        %528 = vmatpush1.msra.mxu0 0.0
        %529 = vmatprep.subr.mxu0 0.0
        %530 = vmatpush1.msra.mxu0 0.0
        %531 = vmatprep.mubr.f32.mxu0 0.0
        %532 = vmatmul.mubr.f32.gmra.mrb[0].mxu0 %v372
        %v533 = vpop.f32.mrb[0].mxu0
        %v534 = vadd.f32 0.0, %v533
        %v535 = vpop.f32.mrb[0].mxu0
        %v536 = vadd.f32 0.0, %v535
        %537 = vmatprep.mubr.f32.mxu0 0.0
        %538 = vmatmul.mubr.f32.gmra.mrb[0].mxu0 %v375
        %v539 = vpop.f32.mrb[0].mxu0
        %v540 = vadd.f32 0.0, %v539
        %v541 = vpop.f32.mrb[0].mxu0
        %v542 = vadd.f32 0.0, %v541
        %543 = vmatprep.mubr.f32.mxu0 0.0
        %544 = vmatmul.mubr.f32.gmra.mrb[0].mxu0 %v378
        %v545 = vpop.f32.mrb[0].mxu0
        %v546 = vadd.f32 0.0, %v545
        %v547 = vpop.f32.mrb[0].mxu0
        %v548 = vadd.f32 0.0, %v547
        %549 = vmatprep.mubr.f32.mxu0 0.0
        %550 = vmatmul.mubr.f32.gmra.mrb[0].mxu0 %v381
        %v551 = vpop.f32.mrb[0].mxu0
        %v552 = vadd.f32 0.0, %v551
        %v553 = vpop.f32.mrb[0].mxu0
        %v554 = vadd.f32 0.0, %v553
        %555 = vmatprep.mubr.f32.mxu0 0.0
        %556 = vmatmul.mubr.f32.gmra.mrb[0].mxu0 %v384
        %v557 = vpop.f32.mrb[0].mxu0
        %v558 = vadd.f32 0.0, %v557
        %v559 = vpop.f32.mrb[0].mxu0
        %v560 = vadd.f32 0.0, %v559
        %561 = vmatprep.mubr.f32.mxu0 0.0
        %562 = vmatmul.mubr.f32.gmra.mrb[0].mxu0 %v387
        %v563 = vpop.f32.mrb[0].mxu0
        %v564 = vadd.f32 0.0, %v563
        %v565 = vpop.f32.mrb[0].mxu0
        %v566 = vadd.f32 0.0, %v565
        %567 = vmatprep.mubr.f32.mxu0 0.0
        %568 = vmatmul.mubr.f32.gmra.mrb[0].mxu0 %v390
        %v569 = vpop.f32.mrb[0].mxu0
        %v570 = vadd.f32 0.0, %v569
        %v571 = vpop.f32.mrb[0].mxu0
        %v572 = vadd.f32 0.0, %v571
        %573 = vmatprep.mubr.f32.mxu0 0.0
        %574 = vmatmul.mubr.f32.gmra.mrb[0].mxu0 %v393
        %v575 = vpop.f32.mrb[0].mxu0
        %v576 = vadd.f32 0.0, %v575
        %v577 = vpop.f32.mrb[0].mxu0
        %v578 = vadd.f32 0.0, %v577
        %579 = vmatprep.mubr.f32.mxu0 0.0
        %580 = vmatmul.mubr.f32.gmra.mrb[0].mxu0 %v396
        %v581 = vpop.f32.mrb[0].mxu0
        %v582 = vadd.f32 0.0, %v581
        %v583 = vpop.f32.mrb[0].mxu0
        %v584 = vadd.f32 0.0, %v583
        %585 = vmatprep.mubr.f32.mxu0 0.0
        %586 = vmatmul.mubr.f32.gmra.mrb[0].mxu0 %v399
        %v587 = vpop.f32.mrb[0].mxu0
        %v588 = vadd.f32 0.0, %v587
        %v589 = vpop.f32.mrb[0].mxu0
        %v590 = vadd.f32 0.0, %v589
        %591 = vmatprep.mubr.f32.mxu0 0.0
        %592 = vmatmul.mubr.f32.gmra.mrb[0].mxu0 %v402
        %v593 = vpop.f32.mrb[0].mxu0
        %v594 = vadd.f32 0.0, %v593
        %v595 = vpop.f32.mrb[0].mxu0
        %v596 = vadd.f32 0.0, %v595
        %597 = vmatprep.mubr.f32.mxu0 0.0
        %598 = vmatmul.mubr.f32.gmra.mrb[0].mxu0 %v405
        %v599 = vpop.f32.mrb[0].mxu0
        %v600 = vadd.f32 0.0, %v599
        %v601 = vpop.f32.mrb[0].mxu0
        %v602 = vadd.f32 0.0, %v601
        %603 = vmatprep.mubr.f32.mxu0 0.0
        %604 = vmatmul.mubr.f32.gmra.mrb[0].mxu0 %v408
        %v605 = vpop.f32.mrb[0].mxu0
        %v606 = vadd.f32 0.0, %v605
        %v607 = vpop.f32.mrb[0].mxu0
        %v608 = vadd.f32 0.0, %v607
        %609 = vmatprep.mubr.f32.mxu0 0.0
        %610 = vmatmul.mubr.f32.gmra.mrb[0].mxu0 %v411
        %v611 = vpop.f32.mrb[0].mxu0
        %v612 = vadd.f32 0.0, %v611
        %v613 = vpop.f32.mrb[0].mxu0
        %v614 = vadd.f32 0.0, %v613
        %615 = vmatprep.mubr.f32.mxu0 0.0
        %616 = vmatmul.mubr.f32.gmra.mrb[0].mxu0 %v414
        %v617 = vpop.f32.mrb[0].mxu0
        %v618 = vadd.f32 0.0, %v617
        %v619 = vpop.f32.mrb[0].mxu0
        %v620 = vadd.f32 0.0, %v619
        %621 = vmatprep.mubr.f32.mxu0 0.0
        %622 = vmatmul.mubr.f32.gmra.mrb[0].mxu0 %v417
        %v623 = vpop.f32.mrb[0].mxu0
        %v624 = vadd.f32 0.0, %v623
        %v625 = vpop.f32.mrb[0].mxu0
        %v626 = vadd.f32 0.0, %v625
        %627 = vmatprep.mubr.f32.mxu0 0.0
        %628 = vmatmul.mubr.f32.gmra.mrb[0].mxu0 %v420
        %v629 = vpop.f32.mrb[0].mxu0
        %v630 = vadd.f32 0.0, %v629
        %v631 = vpop.f32.mrb[0].mxu0
        %v632 = vadd.f32 0.0, %v631
        %633 = vmatprep.mubr.f32.mxu0 0.0
        %634 = vmatmul.mubr.f32.gmra.mrb[0].mxu0 %v423
        %v635 = vpop.f32.mrb[0].mxu0
        %v636 = vadd.f32 0.0, %v635
        %v637 = vpop.f32.mrb[0].mxu0
        %v638 = vadd.f32 0.0, %v637
        %639 = vmatprep.mubr.f32.mxu0 0.0
        %640 = vmatmul.mubr.f32.gmra.mrb[0].mxu0 %v426
        %v641 = vpop.f32.mrb[0].mxu0
        %v642 = vadd.f32 0.0, %v641
        %v643 = vpop.f32.mrb[0].mxu0
        %v644 = vadd.f32 0.0, %v643
        %645 = vmatprep.mubr.f32.mxu0 0.0
        %646 = vmatmul.mubr.f32.gmra.mrb[0].mxu0 %v429
        %v647 = vpop.f32.mrb[0].mxu0
        %v648 = vadd.f32 0.0, %v647
        %v649 = vpop.f32.mrb[0].mxu0
        %v650 = vadd.f32 0.0, %v649
        %651 = vmatprep.mubr.f32.mxu0 0.0
        %652 = vmatmul.mubr.f32.gmra.mrb[0].mxu0 %v432
        %v653 = vpop.f32.mrb[0].mxu0
        %v654 = vadd.f32 0.0, %v653
        %v655 = vpop.f32.mrb[0].mxu0
        %v656 = vadd.f32 0.0, %v655
        %657 = vmatprep.mubr.f32.mxu0 0.0
        %658 = vmatmul.mubr.f32.gmra.mrb[0].mxu0 %v435
        %v659 = vpop.f32.mrb[0].mxu0
        %v660 = vadd.f32 0.0, %v659
        %v661 = vpop.f32.mrb[0].mxu0
        %v662 = vadd.f32 0.0, %v661
        %663 = vmatprep.mubr.f32.mxu0 0.0
        %664 = vmatmul.mubr.f32.gmra.mrb[0].mxu0 %v438
        %v665 = vpop.f32.mrb[0].mxu0
        %v666 = vadd.f32 0.0, %v665
        %v667 = vpop.f32.mrb[0].mxu0
        %v668 = vadd.f32 0.0, %v667
        %669 = vmatprep.mubr.f32.mxu0 0.0
        %670 = vmatmul.mubr.f32.gmra.mrb[0].mxu0 %v441
        %v671 = vpop.f32.mrb[0].mxu0
        %v672 = vadd.f32 0.0, %v671
        %v673 = vpop.f32.mrb[0].mxu0
        %v674 = vadd.f32 0.0, %v673
        %675 = vmatprep.mubr.f32.mxu0 0.0
        %676 = vmatmul.mubr.f32.gmra.mrb[0].mxu0 %v444
        %v677 = vpop.f32.mrb[0].mxu0
        %v678 = vadd.f32 0.0, %v677
        %v679 = vpop.f32.mrb[0].mxu0
        %v680 = vadd.f32 0.0, %v679
        %681 = vmatprep.mubr.f32.mxu0 0.0
        %682 = vmatmul.mubr.f32.gmra.mrb[0].mxu0 %v447
        %v683 = vpop.f32.mrb[0].mxu0
        %v684 = vadd.f32 0.0, %v683
        %v685 = vpop.f32.mrb[0].mxu0
        %v686 = vadd.f32 0.0, %v685
        %687 = vmatprep.mubr.f32.mxu0 0.0
        %688 = vmatmul.mubr.f32.gmra.mrb[0].mxu0 %v450
        %v689 = vpop.f32.mrb[0].mxu0
        %v690 = vadd.f32 0.0, %v689
        %v691 = vpop.f32.mrb[0].mxu0
        %v692 = vadd.f32 0.0, %v691
        %693 = vmatprep.mubr.f32.mxu0 0.0
        %694 = vmatmul.mubr.f32.gmra.mrb[0].mxu0 %v453
        %v695 = vpop.f32.mrb[0].mxu0
        %v696 = vadd.f32 0.0, %v695
        %v697 = vpop.f32.mrb[0].mxu0
        %v698 = vadd.f32 0.0, %v697
        %699 = vmatprep.mubr.f32.mxu0 0.0
        %700 = vmatmul.mubr.f32.gmra.mrb[0].mxu0 %v456
        %v701 = vpop.f32.mrb[0].mxu0
        %v702 = vadd.f32 0.0, %v701
        %v703 = vpop.f32.mrb[0].mxu0
        %v704 = vadd.f32 0.0, %v703
        %705 = vmatprep.mubr.f32.mxu0 0.0
        %706 = vmatmul.mubr.f32.gmra.mrb[0].mxu0 %v459
        %v707 = vpop.f32.mrb[0].mxu0
        %v708 = vadd.f32 0.0, %v707
        %v709 = vpop.f32.mrb[0].mxu0
        %v710 = vadd.f32 0.0, %v709
        %711 = vmatprep.mubr.f32.mxu0 0.0
        %712 = vmatmul.mubr.f32.gmra.mrb[0].mxu0 %v462
        %v713 = vpop.f32.mrb[0].mxu0
        %v714 = vadd.f32 0.0, %v713
        %v715 = vpop.f32.mrb[0].mxu0
        %v716 = vadd.f32 0.0, %v715
        %717 = vmatprep.mubr.f32.mxu0 0.0
        %718 = vmatmul.mubr.f32.gmra.mrb[0].mxu0 %v465
        %v719 = vpop.f32.mrb[0].mxu0
        %v720 = vadd.f32 0.0, %v719
        %v721 = vpop.f32.mrb[0].mxu0
        %v722 = vadd.f32 0.0, %v721
        %723 = vdwg.mxu0
        %v724 = vmax.f32 %v534, %v536
        %725 = vmax.xlane.f32.xlu0 %v724
        %v726 = vpop.xlane.xlu0 %725
        %v727 = vmax.f32 %v540, %v542
        %728 = vmax.xlane.f32.xlu0 %v727
        %v729 = vpop.xlane.xlu0 %728
        %v730 = vmax.f32 %v546, %v548
        %731 = vmax.xlane.f32.xlu0 %v730
        %v732 = vpop.xlane.xlu0 %731
        %v733 = vmax.f32 %v552, %v554
        %734 = vmax.xlane.f32.xlu0 %v733
        %v735 = vpop.xlane.xlu0 %734
        %v736 = vmax.f32 %v558, %v560
        %737 = vmax.xlane.f32.xlu0 %v736
        %v738 = vpop.xlane.xlu0 %737
        %v739 = vmax.f32 %v564, %v566
        %740 = vmax.xlane.f32.xlu0 %v739
        %v741 = vpop.xlane.xlu0 %740
        %v742 = vmax.f32 %v570, %v572
        %743 = vmax.xlane.f32.xlu0 %v742
        %v744 = vpop.xlane.xlu0 %743
        %v745 = vmax.f32 %v576, %v578
        %746 = vmax.xlane.f32.xlu0 %v745
        %v747 = vpop.xlane.xlu0 %746
        %v748 = vmax.f32 %v582, %v584
        %749 = vmax.xlane.f32.xlu0 %v748
        %v750 = vpop.xlane.xlu0 %749
        %v751 = vmax.f32 %v588, %v590
        %752 = vmax.xlane.f32.xlu0 %v751
        %v753 = vpop.xlane.xlu0 %752
        %v754 = vmax.f32 %v594, %v596
        %755 = vmax.xlane.f32.xlu0 %v754
        %v756 = vpop.xlane.xlu0 %755
        %v757 = vmax.f32 %v600, %v602
        %758 = vmax.xlane.f32.xlu0 %v757
        %v759 = vpop.xlane.xlu0 %758
        %v760 = vmax.f32 %v606, %v608
        %761 = vmax.xlane.f32.xlu0 %v760
        %v762 = vpop.xlane.xlu0 %761
        %v763 = vmax.f32 %v612, %v614
        %764 = vmax.xlane.f32.xlu0 %v763
        %v765 = vpop.xlane.xlu0 %764
        %v766 = vmax.f32 %v618, %v620
        %767 = vmax.xlane.f32.xlu0 %v766
        %v768 = vpop.xlane.xlu0 %767
        %v769 = vmax.f32 %v624, %v626
        %770 = vmax.xlane.f32.xlu0 %v769
        %v771 = vpop.xlane.xlu0 %770
        %v772 = vmax.f32 %v630, %v632
        %773 = vmax.xlane.f32.xlu0 %v772
        %v774 = vpop.xlane.xlu0 %773
        %v775 = vmax.f32 %v636, %v638
        %776 = vmax.xlane.f32.xlu0 %v775
        %v777 = vpop.xlane.xlu0 %776
        %v778 = vmax.f32 %v642, %v644
        %779 = vmax.xlane.f32.xlu0 %v778
        %v780 = vpop.xlane.xlu0 %779
        %v781 = vmax.f32 %v648, %v650
        %782 = vmax.xlane.f32.xlu0 %v781
        %v783 = vpop.xlane.xlu0 %782
        %v784 = vmax.f32 %v654, %v656
        %785 = vmax.xlane.f32.xlu0 %v784
        %v786 = vpop.xlane.xlu0 %785
        %v787 = vmax.f32 %v660, %v662
        %788 = vmax.xlane.f32.xlu0 %v787
        %v789 = vpop.xlane.xlu0 %788
        %v790 = vmax.f32 %v666, %v668
        %791 = vmax.xlane.f32.xlu0 %v790
        %v792 = vpop.xlane.xlu0 %791
        %v793 = vmax.f32 %v672, %v674
        %794 = vmax.xlane.f32.xlu0 %v793
        %v795 = vpop.xlane.xlu0 %794
        %v796 = vmax.f32 %v678, %v680
        %797 = vmax.xlane.f32.xlu0 %v796
        %v798 = vpop.xlane.xlu0 %797
        %v799 = vmax.f32 %v684, %v686
        %800 = vmax.xlane.f32.xlu0 %v799
        %v801 = vpop.xlane.xlu0 %800
        %v802 = vmax.f32 %v690, %v692
        %803 = vmax.xlane.f32.xlu0 %v802
        %v804 = vpop.xlane.xlu0 %803
        %v805 = vmax.f32 %v696, %v698
        %806 = vmax.xlane.f32.xlu0 %v805
        %v807 = vpop.xlane.xlu0 %806
        %v808 = vmax.f32 %v702, %v704
        %809 = vmax.xlane.f32.xlu0 %v808
        %v810 = vpop.xlane.xlu0 %809
        %v811 = vmax.f32 %v708, %v710
        %812 = vmax.xlane.f32.xlu0 %v811
        %v813 = vpop.xlane.xlu0 %812
        %v814 = vmax.f32 %v714, %v716
        %815 = vmax.xlane.f32.xlu0 %v814
        %v816 = vpop.xlane.xlu0 %815
        %v817 = vmax.f32 %v720, %v722
        %818 = vmax.xlane.f32.xlu0 %v817
        %v819 = vpop.xlane.xlu0 %818
        %v820 = vsub.f32 %v534, %v726
        %v821 = vsub.f32 %v536, %v726
        %v822 = vsub.f32 %v540, %v729
        %v823 = vsub.f32 %v542, %v729
        %v824 = vsub.f32 %v546, %v732
        %v825 = vsub.f32 %v548, %v732
        %v826 = vsub.f32 %v552, %v735
        %v827 = vsub.f32 %v554, %v735
        %v828 = vsub.f32 %v558, %v738
        %v829 = vsub.f32 %v560, %v738
        %v830 = vsub.f32 %v564, %v741
        %v831 = vsub.f32 %v566, %v741
        %v832 = vsub.f32 %v570, %v744
        %v833 = vsub.f32 %v572, %v744
        %v834 = vsub.f32 %v576, %v747
        %v835 = vsub.f32 %v578, %v747
        %v836 = vsub.f32 %v582, %v750
        %v837 = vsub.f32 %v584, %v750
        %v838 = vsub.f32 %v588, %v753
        %v839 = vsub.f32 %v590, %v753
        %v840 = vsub.f32 %v594, %v756
        %v841 = vsub.f32 %v596, %v756
        %v842 = vsub.f32 %v600, %v759
        %v843 = vsub.f32 %v602, %v759
        %v844 = vsub.f32 %v606, %v762
        %v845 = vsub.f32 %v608, %v762
        %v846 = vsub.f32 %v612, %v765
        %v847 = vsub.f32 %v614, %v765
        %v848 = vsub.f32 %v618, %v768
        %v849 = vsub.f32 %v620, %v768
        %v850 = vsub.f32 %v624, %v771
        %v851 = vsub.f32 %v626, %v771
        %v852 = vsub.f32 %v630, %v774
        %v853 = vsub.f32 %v632, %v774
        %v854 = vsub.f32 %v636, %v777
        %v855 = vsub.f32 %v638, %v777
        %v856 = vsub.f32 %v642, %v780
        %v857 = vsub.f32 %v644, %v780
        %v858 = vsub.f32 %v648, %v783
        %v859 = vsub.f32 %v650, %v783
        %v860 = vsub.f32 %v654, %v786
        %v861 = vsub.f32 %v656, %v786
        %v862 = vsub.f32 %v660, %v789
        %v863 = vsub.f32 %v662, %v789
        %v864 = vsub.f32 %v666, %v792
        %v865 = vsub.f32 %v668, %v792
        %v866 = vsub.f32 %v672, %v795
        %v867 = vsub.f32 %v674, %v795
        %v868 = vsub.f32 %v678, %v798
        %v869 = vsub.f32 %v680, %v798
        %v870 = vsub.f32 %v684, %v801
        %v871 = vsub.f32 %v686, %v801
        %v872 = vsub.f32 %v690, %v804
        %v873 = vsub.f32 %v692, %v804
        %v874 = vsub.f32 %v696, %v807
        %v875 = vsub.f32 %v698, %v807
        %v876 = vsub.f32 %v702, %v810
        %v877 = vsub.f32 %v704, %v810
        %v878 = vsub.f32 %v708, %v813
        %v879 = vsub.f32 %v710, %v813
        %v880 = vsub.f32 %v714, %v816
        %v881 = vsub.f32 %v716, %v816
        %v882 = vsub.f32 %v720, %v819
        %v883 = vsub.f32 %v722, %v819
        %v884 = vmul.f32 %v820, 1.442695
        %v885 = vpow.pop %v884
        %v886 = vmul.f32 %v821, 1.442695
        %v887 = vpow.pop %v886
        %v888 = vmul.f32 %v822, 1.442695
        %v889 = vpow.pop %v888
        %v890 = vmul.f32 %v823, 1.442695
        %v891 = vpow.pop %v890
        %v892 = vmul.f32 %v824, 1.442695
        %v893 = vpow.pop %v892
        %v894 = vmul.f32 %v825, 1.442695
        %v895 = vpow.pop %v894
        %v896 = vmul.f32 %v826, 1.442695
        %v897 = vpow.pop %v896
        %v898 = vmul.f32 %v827, 1.442695
        %v899 = vpow.pop %v898
        %v900 = vmul.f32 %v828, 1.442695
        %v901 = vpow.pop %v900
        %v902 = vmul.f32 %v829, 1.442695
        %v903 = vpow.pop %v902
        %v904 = vmul.f32 %v830, 1.442695
        %v905 = vpow.pop %v904
        %v906 = vmul.f32 %v831, 1.442695
        %v907 = vpow.pop %v906
        %v908 = vmul.f32 %v832, 1.442695
        %v909 = vpow.pop %v908
        %v910 = vmul.f32 %v833, 1.442695
        %v911 = vpow.pop %v910
        %v912 = vmul.f32 %v834, 1.442695
        %v913 = vpow.pop %v912
        %v914 = vmul.f32 %v835, 1.442695
        %v915 = vpow.pop %v914
        %v916 = vmul.f32 %v836, 1.442695
        %v917 = vpow.pop %v916
        %v918 = vmul.f32 %v837, 1.442695
        %v919 = vpow.pop %v918
        %v920 = vmul.f32 %v838, 1.442695
        %v921 = vpow.pop %v920
        %v922 = vmul.f32 %v839, 1.442695
        %v923 = vpow.pop %v922
        %v924 = vmul.f32 %v840, 1.442695
        %v925 = vpow.pop %v924
        %v926 = vmul.f32 %v841, 1.442695
        %v927 = vpow.pop %v926
        %v928 = vmul.f32 %v842, 1.442695
        %v929 = vpow.pop %v928
        %v930 = vmul.f32 %v843, 1.442695
        %v931 = vpow.pop %v930
        %v932 = vmul.f32 %v844, 1.442695
        %v933 = vpow.pop %v932
        %v934 = vmul.f32 %v845, 1.442695
        %v935 = vpow.pop %v934
        %v936 = vmul.f32 %v846, 1.442695
        %v937 = vpow.pop %v936
        %v938 = vmul.f32 %v847, 1.442695
        %v939 = vpow.pop %v938
        %v940 = vmul.f32 %v848, 1.442695
        %v941 = vpow.pop %v940
        %v942 = vmul.f32 %v849, 1.442695
        %v943 = vpow.pop %v942
        %v944 = vmul.f32 %v850, 1.442695
        %v945 = vpow.pop %v944
        %v946 = vmul.f32 %v851, 1.442695
        %v947 = vpow.pop %v946
        %v948 = vmul.f32 %v852, 1.442695
        %v949 = vpow.pop %v948
        %v950 = vmul.f32 %v853, 1.442695
        %v951 = vpow.pop %v950
        %v952 = vmul.f32 %v854, 1.442695
        %v953 = vpow.pop %v952
        %v954 = vmul.f32 %v855, 1.442695
        %v955 = vpow.pop %v954
        %v956 = vmul.f32 %v856, 1.442695
        %v957 = vpow.pop %v956
        %v958 = vmul.f32 %v857, 1.442695
        %v959 = vpow.pop %v958
        %v960 = vmul.f32 %v858, 1.442695
        %v961 = vpow.pop %v960
        %v962 = vmul.f32 %v859, 1.442695
        %v963 = vpow.pop %v962
        %v964 = vmul.f32 %v860, 1.442695
        %v965 = vpow.pop %v964
        %v966 = vmul.f32 %v861, 1.442695
        %v967 = vpow.pop %v966
        %v968 = vmul.f32 %v862, 1.442695
        %v969 = vpow.pop %v968
        %v970 = vmul.f32 %v863, 1.442695
        %v971 = vpow.pop %v970
        %v972 = vmul.f32 %v864, 1.442695
        %v973 = vpow.pop %v972
        %v974 = vmul.f32 %v865, 1.442695
        %v975 = vpow.pop %v974
        %v976 = vmul.f32 %v866, 1.442695
        %v977 = vpow.pop %v976
        %v978 = vmul.f32 %v867, 1.442695
        %v979 = vpow.pop %v978
        %v980 = vmul.f32 %v868, 1.442695
        %v981 = vpow.pop %v980
        %v982 = vmul.f32 %v869, 1.442695
        %v983 = vpow.pop %v982
        %v984 = vmul.f32 %v870, 1.442695
        %v985 = vpow.pop %v984
        %v986 = vmul.f32 %v871, 1.442695
        %v987 = vpow.pop %v986
        %v988 = vmul.f32 %v872, 1.442695
        %v989 = vpow.pop %v988
        %v990 = vmul.f32 %v873, 1.442695
        %v991 = vpow.pop %v990
        %v992 = vmul.f32 %v874, 1.442695
        %v993 = vpow.pop %v992
        %v994 = vmul.f32 %v875, 1.442695
        %v995 = vpow.pop %v994
        %v996 = vmul.f32 %v876, 1.442695
        %v997 = vpow.pop %v996
        %v998 = vmul.f32 %v877, 1.442695
        %v999 = vpow.pop %v998
        %v1000 = vmul.f32 %v878, 1.442695
        %v1001 = vpow.pop %v1000
        %v1002 = vmul.f32 %v879, 1.442695
        %v1003 = vpow.pop %v1002
        %v1004 = vmul.f32 %v880, 1.442695
        %v1005 = vpow.pop %v1004
        %v1006 = vmul.f32 %v881, 1.442695
        %v1007 = vpow.pop %v1006
        %v1008 = vmul.f32 %v882, 1.442695
        %v1009 = vpow.pop %v1008
        %v1010 = vmul.f32 %v883, 1.442695
        %v1011 = vpow.pop %v1010
        %1012 = vmatprep.subr.mxu0 %v887
        %1013 = vmatpush1.xpose.msra.mxu0 %v885
        %1014 = vmatprep.subr.mxu0 %v891
        %1015 = vmatpush1.xpose.msra.mxu0 %v889
        %1016 = vmatprep.subr.mxu0 %v895
        %1017 = vmatpush1.xpose.msra.mxu0 %v893
        %1018 = vmatprep.subr.mxu0 %v899
        %1019 = vmatpush1.xpose.msra.mxu0 %v897
        %1020 = vmatprep.subr.mxu0 %v903
        %1021 = vmatpush1.xpose.msra.mxu0 %v901
        %1022 = vmatprep.subr.mxu0 %v907
        %1023 = vmatpush1.xpose.msra.mxu0 %v905
        %1024 = vmatprep.subr.mxu0 %v911
        %1025 = vmatpush1.xpose.msra.mxu0 %v909
        %1026 = vmatprep.subr.mxu0 %v915
        %1027 = vmatpush1.xpose.msra.mxu0 %v913
        %1028 = vmatprep.subr.mxu0 %v919
        %1029 = vmatpush1.xpose.msra.mxu0 %v917
        %1030 = vmatprep.subr.mxu0 %v923
        %1031 = vmatpush1.xpose.msra.mxu0 %v921
        %1032 = vmatprep.subr.mxu0 %v927
        %1033 = vmatpush1.xpose.msra.mxu0 %v925
        %1034 = vmatprep.subr.mxu0 %v931
        %1035 = vmatpush1.xpose.msra.mxu0 %v929
        %1036 = vmatprep.subr.mxu0 %v935
        %1037 = vmatpush1.xpose.msra.mxu0 %v933
        %1038 = vmatprep.subr.mxu0 %v939
        %1039 = vmatpush1.xpose.msra.mxu0 %v937
        %1040 = vmatprep.subr.mxu0 %v943
        %1041 = vmatpush1.xpose.msra.mxu0 %v941
        %1042 = vmatprep.subr.mxu0 %v947
        %1043 = vmatpush1.xpose.msra.mxu0 %v945
        %1044 = vmatprep.subr.mxu0 %v951
        %1045 = vmatpush1.xpose.msra.mxu0 %v949
        %1046 = vmatprep.subr.mxu0 %v955
        %1047 = vmatpush1.xpose.msra.mxu0 %v953
        %1048 = vmatprep.subr.mxu0 %v959
        %1049 = vmatpush1.xpose.msra.mxu0 %v957
        %1050 = vmatprep.subr.mxu0 %v963
        %1051 = vmatpush1.xpose.msra.mxu0 %v961
        %1052 = vmatprep.subr.mxu0 %v967
        %1053 = vmatpush1.xpose.msra.mxu0 %v965
        %1054 = vmatprep.subr.mxu0 %v971
        %1055 = vmatpush1.xpose.msra.mxu0 %v969
        %1056 = vmatprep.subr.mxu0 %v975
        %1057 = vmatpush1.xpose.msra.mxu0 %v973
        %1058 = vmatprep.subr.mxu0 %v979
        %1059 = vmatpush1.xpose.msra.mxu0 %v977
        %1060 = vmatprep.subr.mxu0 %v983
        %1061 = vmatpush1.xpose.msra.mxu0 %v981
        %1062 = vmatprep.subr.mxu0 %v987
        %1063 = vmatpush1.xpose.msra.mxu0 %v985
        %1064 = vmatprep.subr.mxu0 %v991
        %1065 = vmatpush1.xpose.msra.mxu0 %v989
        %1066 = vmatprep.subr.mxu0 %v995
        %1067 = vmatpush1.xpose.msra.mxu0 %v993
        %1068 = vmatprep.subr.mxu0 %v999
        %1069 = vmatpush1.xpose.msra.mxu0 %v997
        %1070 = vmatprep.subr.mxu0 %v1003
        %1071 = vmatpush1.xpose.msra.mxu0 %v1001
        %1072 = vmatprep.subr.mxu0 %v1007
        %1073 = vmatpush1.xpose.msra.mxu0 %v1005
        %1074 = vmatprep.subr.mxu0 %v1011
        %1075 = vmatpush1.xpose.msra.mxu0 %v1009
        %1076 = vmatprep.mubr.f32.mxu0 %v305
        %1077 = vmatmul.mubr.f32.gmra.mrb[0].mxu0 %v304
        %v1078 = vpop.f32.mrb[0].mxu0
        %v1079 = vadd.f32 0.0, %v1078
        %v1080 = vpop.f32.mrb[0].mxu0
        %v1081 = vadd.f32 0.0, %v1080
        %1082 = vdwg.mxu0
        %v1083 = vrcp.pop %v1079
        %v1084 = vrcp.pop %v1081
        %v1085 = vmul.f32 %v1079, %v1083
        %v1086 = vmul.f32 %v1081, %v1084
        %v1087 = vsub.f32 2.0, %v1085
        %v1088 = vsub.f32 2.0, %v1086
        %v1089 = vmul.f32 %v1083, %v1087
        %v1090 = vmul.f32 %v1084, %v1088
        %v1091 = vlaneseq
        %v1092 = vshrl.u32 %v1091, 7
        %v1093 = vsub.s32 4, %v1092
        %v1094 = vrot.slane %v1089, %v1093
        %v1095 = vlaneseq
        %v1096 = vshrl.u32 %v1095, 7
        %v1097 = vsub.s32 4, %v1096
        %v1098 = vrot.slane %v1090, %v1097
        %v1099 = vmul.f32 %v1079, %v1094
        %v1100 = vmul.f32 %v1081, %v1098
        %1101 = vst [vmem:[%s164] sm:$0xff] %v1099
        %1102 = vst [vmem:[%s164 + $0x8] sm:$0xff] %v1100
        %s1103 = sand.u32 %s93, 1
        %s1104 = scalar_lea.sflag [#allocation4], %s1103
        %s1105 = sand.u32 %s93, 1
        %s1106 = smul.addr %s1105, 16
        %s1107 = scalar_lea.vmem [#allocation3], %s1106
        // Predicated region
        $region33: #{tpu_custom_call.1} parent=31 // pred_check
          %p1108 = pneg %p103
        $region34: #{tpu_custom_call.1} parent=31 // pred_check_branch
          %1110 = sbr.rel (%p1108) target = $region36
        $region35: #{tpu_custom_call.1} parent=31 // pred_region
          %s1111 = smul.u32 2, %s17
          %s1113 = ssub.s32 256, 256
          %1114 = vsyncadd %s1104, %s1113
          %s1115 = smul.addr %s1111, 128
          %s1116 = scalar_lea.hbm %s3, %s1115
          %s1118 = sshll.u32 %s1107, 4
          %s1119 = int_to_ptr.vmem [resolvable:$true] %s1118
          %1121 = dma.vmem_to_hbm [thread:$0]  %s1119, 256, %s1116, %s1104
        $region36: #{tpu_custom_call.1} parent=31 // pred_fallthru
          _
      $region32: #{tpu_custom_call.1} parent=5 // pred_fallthru
        _
      %p1122 = scmp.le.s32.totalorder 2, %s12
      // Predicated region
      $region37: #{tpu_custom_call.1} parent=5 // pred_check
        %p1123 = pneg %p1122
      $region38: #{tpu_custom_call.1} parent=5 // pred_check_branch
        %1125 = sbr.rel (%p1123) target = $region40
      $region39: #{tpu_custom_call.1} parent=5 // pred_region
        %s1126 = ssub.s32 %s12, 2
        // Predicated region
        $region41: #{tpu_custom_call.1} parent=39 // pred_check
          %p1127 = pneg %p109
        $region42: #{tpu_custom_call.1} parent=39 // pred_check_branch
          %1129 = sbr.rel (%p1127) target = $region44
        $region43: #{tpu_custom_call.1} parent=39 // pred_region
          %s1130 = sand.u32 %s94, 1
          %s1131 = scalar_lea.sflag [#allocation4], %s1130
          %s1132 = sand.u32 %s94, 1
          %s1133 = smul.addr %s1132, 16
          %s1134 = scalar_lea.vmem [#allocation3], %s1133
          %1135 = dma.done %s1131, 256
        $region44: #{tpu_custom_call.1} parent=39 // pred_fallthru
          _
      $region40: #{tpu_custom_call.1} parent=5 // pred_fallthru
        _
    $region6: #{tpu_custom_call.1} parent=1 // loop_footer
      %s16 = sadd.s32 1, %s12
    $region7: #{tpu_custom_call.1} parent=1 // loop_footer_branch
      %11 = sbr.rel target = $region3
    $region8: #{tpu_custom_call.1} parent=1 // loop_exit
      _
    %1136 = vsyncpa [#allocation4], 1
    %s1137 = scalar_lea.sflag [#allocation4], 1
    %1138 = vsyncpa %s1137, 1

</llo_original>
